<compile_context>
chip_gen: v6e
topology: v6e:2x2x1
jax: 0.10.0
libtpu: 0.0.40
codegen_flags: <defaults>
</compile_context>

<pallas_src>
import math

import jax
import jax.numpy as jnp
from jax.experimental import pallas as pl
from jax.experimental.pallas import tpu as pltpu


def _build_pe_table(d_model: int, max_len: int = 10) -> jnp.ndarray:
    """Deterministic sinusoidal table, identical to the PyTorch __init__."""
    position = jnp.arange(0, max_len, dtype=jnp.float32)[:, None]          # (max_len, 1)
    div_term = jnp.exp(
        jnp.arange(0, d_model, 2, dtype=jnp.float32)
        * -(math.log(10000.0) / d_model)
    )                                                                       # (ceil(d/2),)
    pe = jnp.zeros((max_len, d_model), dtype=jnp.float32)
    pe = pe.at[:, 0::2].set(jnp.sin(position * div_term))
    # Slice div_term so an odd d_model doesn't break (cos slice has floor(d/2) cols).
    pe = pe.at[:, 1::2].set(jnp.cos(position * div_term[: d_model // 2]))
    return pe[None, :, :]                                                   # (1, max_len, d_model)


def _add_pe_kernel(x_ref, pe_ref, o_ref):
    # x_ref/o_ref: (rb, cw) block of flattened batch rows; pe_ref: (1, cw)
    # broadcast row resident in VMEM.  Plain sublane-broadcast add.
    o_ref[...] = x_ref[...] + pe_ref[...]


def _sublane_pack(itemsize: int) -> int:
    # Sub-32-bit dtypes pack along sublanes: 8 rows f32, 16 bf16, 32 int8/fp8.
    return {4: 8, 2: 16, 1: 32}.get(itemsize, 8)


def _floor_mult(v: int, m: int) -> int:
    return (v // m) * m


def _ceil_mult(v: int, m: int) -> int:
    return ((v + m - 1) // m) * m


def _choose_blocks(n_rows: int, row: int, itemsize: int, target_bytes: int):
    """Pick (rb, cw): a block of rb flattened rows x cw lane elems, ~target_bytes."""
    sub = _sublane_pack(itemsize)
    row_bytes = row * itemsize

    # Lane (column) chunk: the full row if it fits the budget, otherwise a
    # multiple of 128 sized so `sub` rows of it stay within the target.  This
    # replaces the old pathological 8*row_bytes fallback.
    if row_bytes <= target_bytes:
        cw = row
    else:
        cw = max(128, _floor_mult(target_bytes // (sub * itemsize), 128))
        cw = min(cw, _ceil_mult(row, 128))

    # Row chunk: as many rows as fit the budget, sublane-pack aligned
    # (or the full batch, which is always a legal block dim).
    rb = target_bytes // max(cw * itemsize, 1)
    if rb >= n_rows:
        rb = n_rows
    else:
        rb = max(sub, _floor_mult(rb, sub))
        rb = min(rb, n_rows)

    # v7x megacore: make sure there are >=2 grid steps for non-tiny inputs so
    # both TensorCores get work (neutral on single-TC v5e/v6e).
    total_bytes = n_rows * row * itemsize
    if pl.cdiv(n_rows, rb) * pl.cdiv(row, cw) == 1 and total_bytes >= (2 << 20):
        if n_rows >= 2 * sub:
            rb = min(n_rows, _ceil_mult(pl.cdiv(n_rows, 2), sub))
        elif row >= 256:
            cw = max(128, _floor_mult(row // 2, 128))
    return rb, cw


def positional_encoding(
    x: jnp.ndarray,
    pe: jnp.ndarray,
    *,
    target_bytes: int = 4 << 20,      # ~4 MiB blocks: measured mem-bound sweet spot
    donate_x: bool = False,           # alias x's HBM buffer to the output
    use_pallas: bool | None = None,   # None -> auto (skip Pallas for tiny inputs)
) -> jnp.ndarray:
    """x: (B, S, D); pe: (1, max_len, D).  Returns x + pe[:, :S, :]."""
    B, S, D = x.shape
    max_len = pe.shape[1]
    if S > max_len:
        raise ValueError(f"sequence length {S} exceeds max_len {max_len}")

    # NOTE: the table is cast to x.dtype, so for bf16/fp16 inputs the add and
    # output stay in low precision (PyTorch's f32 table would promote).  Exact
    # for the f32 case exercised below.
    pe_sd = pe[0, :S, :].astype(x.dtype)                     # (S, D)

    itemsize = jnp.dtype(x.dtype).itemsize
    total_bytes = x.size * itemsize
    if use_pallas is None:
        # Below ~1 MiB the ~0.35 us/step pallas_call overhead dwarfs the DMA;
        # let XLA fuse the add instead.
        use_pallas = total_bytes >= (1 << 20)
    if not use_pallas:
        return x + pe_sd[None]

    row = S * D
    x2d = x.reshape(B, row)             # lane-dense, contiguous reshape (no copy)
    pe2d = pe_sd.reshape(1, row)
    # TODO(synk): if S*D is not a multiple of 128 the tail vreg of each row is a
    # masked partial store; padding the flattened row would make it fully lane-dense.

    rb, cw = _choose_blocks(B, row, itemsize, target_bytes)
    n_rb = pl.cdiv(B, rb)
    n_cb = pl.cdiv(row, cw)

    # Columns outer / rows inner: the pe block index is constant across the
    # inner row sweep, so it is only (re-)fetched when the column changes.
    grid = (n_cb, n_rb)

    if n_cb == 1:
        # pe block never changes -> one DMA total; don't waste a second buffer.
        pe_spec = pl.BlockSpec((1, cw), lambda c, r: (0, c),
                               pipeline_mode=pl.Buffered(1))
        pe_bufs = 1
    else:
        pe_spec = pl.BlockSpec((1, cw), lambda c, r: (0, c))
        pe_bufs = 2

    blk_bytes = rb * cw * itemsize
    pe_blk_bytes = cw * itemsize
    # Double-buffered x and out, pe buffers, plus headroom for internal scratch.
    vmem_limit = 2 * blk_bytes * 2 + pe_bufs * pe_blk_bytes + (4 << 20)
    vmem_limit = max(8 << 20, min(vmem_limit, 64 << 20))   # stay under v7x physical

    cost = pl.CostEstimate(
        flops=B * S * D,                                   # one add per element
        transcendentals=0,
        bytes_accessed=(2 * B * S * D + S * D) * itemsize,  # x in + out + pe
    )

    out2d = pl.pallas_call(
        _add_pe_kernel,
        out_shape=jax.ShapeDtypeStruct((B, row), x.dtype),
        grid_spec=pltpu.PrefetchScalarGridSpec(
            num_scalar_prefetch=0,
            grid=grid,
            in_specs=[
                pl.BlockSpec((rb, cw), lambda c, r: (r, c)),   # streaming x blocks
                pe_spec,                                       # broadcast pe row
            ],
            out_specs=pl.BlockSpec((rb, cw), lambda c, r: (r, c)),
        ),
        compiler_params=pltpu.CompilerParams(
            dimension_semantics=("parallel", "parallel"),
            vmem_limit_bytes=vmem_limit,
        ),
        cost_estimate=cost,
        input_output_aliases=({0: 0} if donate_x else {}),
    )(x2d, pe2d)

    return out2d.reshape(B, S, D)


if __name__ == "__main__":
    key = jax.random.PRNGKey(0)
    k1, k2 = jax.random.split(key)

    # Case 1: the module's nominal small shape (d_model=32, max_len=10).
    d_model, max_len, batch, seq = 32, 10, 2, 8
    pe = _build_pe_table(d_model, max_len)
    x = jax.random.normal(k1, (batch, seq, d_model), dtype=jnp.float32)
    out = jax.block_until_ready(positional_encoding(x, pe, use_pallas=True))
    ref = x + pe[:, :seq, :]
    assert out.shape == (batch, seq, d_model)
    assert jnp.allclose(out, ref, atol=1e-6), "case 1: mismatch vs reference"

    # Case 2: exercise the chunked 2-D grid and a partial (masked) row block by
    # forcing a tiny block budget (data still small).
    d_model2, max_len2, batch2, seq2 = 96, 64, 10, 64
    pe2 = _build_pe_table(d_model2, max_len2)
    x2 = jax.random.normal(k2, (batch2, seq2, d_model2), dtype=jnp.float32)
    out2 = jax.block_until_ready(
        positional_encoding(x2, pe2, use_pallas=True, target_bytes=16 << 10)
    )
    ref2 = x2 + pe2[:, :seq2, :]
    assert out2.shape == (batch2, seq2, d_model2)
    assert jnp.allclose(out2, ref2, atol=1e-6), "case 2: mismatch vs reference"

    print("KERNEL_OK")
</pallas_src>

<mosaic_0001>
module attributes {stable_mosaic.version = 11 : i64} {
  func.func @_add_pe_kernel(%arg0: i32, %arg1: i32, %arg2: memref<2x256xf32, #tpu.memory_space<vmem>>, %arg3: memref<1x256xf32, #tpu.memory_space<vmem>>, %arg4: memref<2x256xf32, #tpu.memory_space<vmem>>) attributes {dimension_semantics = [#tpu.dimension_semantics<parallel>, #tpu.dimension_semantics<parallel>], iteration_bounds = array<i64: 1, 1>, scalar_prefetch = 0 : i64, scratch_operands = 0 : i64, tpu.core_type = #tpu.core_type<tc>, window_params = [{transform_indices = @transform_0, window_bounds = array<i64: 2, 256>}, {pipeline_mode = #tpu.pipeline_mode<synchronous>, transform_indices = @transform_1, window_bounds = array<i64: 1, 256>}, {transform_indices = @transform_2, window_bounds = array<i64: 2, 256>}]} {
    %c0 = arith.constant 0 : index
    %c0_0 = arith.constant 0 : index
    %0 = vector.load %arg2[%c0, %c0_0] : memref<2x256xf32, #tpu.memory_space<vmem>>, vector<2x256xf32>
    %c0_1 = arith.constant 0 : index
    %c0_2 = arith.constant 0 : index
    %1 = vector.load %arg3[%c0_1, %c0_2] : memref<1x256xf32, #tpu.memory_space<vmem>>, vector<1x256xf32>
    %2 = vector.broadcast %1 : vector<1x256xf32> to vector<2x256xf32>
    %3 = arith.addf %0, %2 : vector<2x256xf32>
    %c0_3 = arith.constant 0 : index
    %c0_4 = arith.constant 0 : index
    %4 = vector.load %arg4[%c0_3, %c0_4] : memref<2x256xf32, #tpu.memory_space<vmem>>, vector<2x256xf32>
    tpu.vector_store %arg4[%c0_3, %c0_4], %3 {strides = array<i32>} : memref<2x256xf32, #tpu.memory_space<vmem>>, vector<2x256xf32>,
    return
  }
  func.func @transform_0(%arg0: i32, %arg1: i32) -> (i32, i32) {
    %c0_i32 = arith.constant 0 : i32
    return %arg1, %arg0 : i32, i32
  }
  func.func @transform_1(%arg0: i32, %arg1: i32) -> (i32, i32) {
    %c0_i32 = arith.constant 0 : i32
    %c0_i32_0 = arith.constant 0 : i32
    return %c0_i32, %arg0 : i32, i32
  }
  func.func @transform_2(%arg0: i32, %arg1: i32) -> (i32, i32) {
    %c0_i32 = arith.constant 0 : i32
    return %arg1, %arg0 : i32, i32
  }
}

</mosaic_0001>

<llo_original>
// kernel: tpu_custom_call.1
$region0: #{tpu_custom_call.1}
  #allocation0 [shape = 'u32[]', space=smem, size = 0x4, offset = 0x4, fixed_abs, tag = 'smem constant byte address 0x4 - core index']
  #allocation1 [shape = 'u32[144,128]{1,0:T(1,128)}', space=vmem, size = 0x12000, scoped, tag = 'internal scratch']
  %s0 = inlined_call_operand.hbm [shape: f32[2,256], index: 0, kind: input, shape index: {}]
  %s1 = inlined_call_operand.hbm [shape: f32[1,256], index: 1, kind: input, shape index: {}]
  %s2 = inlined_call_operand.hbm [shape: f32[2,256], index: 2, kind: output, shape index: {}]
  %s3 = sld [smem:[#allocation0]]
  $region26: #{tpu_custom_call.1} parent=0
    _
  %s5 = ssub.s32 1, %s3
  %s6 = scalar_select 0, %s5, %s3
  $region1: #{tpu_custom_call.1} parent=0
    #allocation2 [shape = 'u8[2048]{0}', space=vmem, size = 0x800, scoped, tag = 'input window, operand 0, single buffered']
    #allocation3 [shape = 's32[1]{0}', space=sflag, size = 0x4, scoped, tag = 'scoped memory for tpu_custom_call.1']
    #allocation4 [shape = 's32[1]{0}', space=sflag, size = 0x4, scoped, tag = 'scoped memory for tpu_custom_call.1']
    #allocation5 [shape = 'u8[1024]{0}', space=vmem, size = 0x400, scoped, tag = 'input window, operand 1, single buffered']
    #allocation6 [shape = 's32[1]{0}', space=sflag, size = 0x4, scoped, tag = 'scoped memory for tpu_custom_call.1']
    #allocation7 [shape = 'u8[2048]{0}', space=vmem, size = 0x800, scoped, tag = 'output window, operand 0, single buffered']
    %7 = vsyncpa [#allocation3], 0
    %8 = vsyncpa [#allocation6], 0
    %9 = vsyncpa [#allocation4], 0
    // Predicated region
    $region2: #{tpu_custom_call.1} parent=1 // pred_check
      _
    $region3: #{tpu_custom_call.1} parent=1 // pred_check_branch
      %11 = sbr.rel (0) target = $region5
    $region4: #{tpu_custom_call.1} parent=1 // pred_region
      %s13 = ssub.s32 64, 64
      %14 = vsyncadd [#allocation3], %s13
      %s16 = sshll.u32 [#allocation2], 4
      %s17 = int_to_ptr.vmem [resolvable:$true] %s16
      %19 = dma.hbm_to_vmem [thread:$0]  %s0, 64, %s17, [#allocation3]
    $region5: #{tpu_custom_call.1} parent=1 // pred_fallthru
      _
    // Predicated region
    $region6: #{tpu_custom_call.1} parent=1 // pred_check
      _
    $region7: #{tpu_custom_call.1} parent=1 // pred_check_branch
      %21 = sbr.rel (0) target = $region9
    $region8: #{tpu_custom_call.1} parent=1 // pred_region
      %s23 = ssub.s32 32, 32
      %24 = vsyncadd [#allocation6], %s23
      %s26 = sshll.u32 [#allocation5], 4
      %s27 = int_to_ptr.vmem [resolvable:$true] %s26
      %29 = dma.hbm_to_vmem [thread:$0]  %s1, 32, %s27, [#allocation6]
    $region9: #{tpu_custom_call.1} parent=1 // pred_fallthru
      _
    // Predicated region
    $region10: #{tpu_custom_call.1} parent=1 // pred_check
      _
    $region11: #{tpu_custom_call.1} parent=1 // pred_check_branch
      %31 = sbr.rel (0) target = $region13
    $region12: #{tpu_custom_call.1} parent=1 // pred_region
      %32 = dma.done [#allocation3], 64
    $region13: #{tpu_custom_call.1} parent=1 // pred_fallthru
      _
    // Predicated region
    $region14: #{tpu_custom_call.1} parent=1 // pred_check
      _
    $region15: #{tpu_custom_call.1} parent=1 // pred_check_branch
      %34 = sbr.rel (0) target = $region17
    $region16: #{tpu_custom_call.1} parent=1 // pred_region
      %35 = dma.done [#allocation6], 32
    $region17: #{tpu_custom_call.1} parent=1 // pred_fallthru
      _
    %v36 = vld [vmem:[#allocation2] sm:$0xf]
    %v37 = vld [vmem:[#allocation5] sm:$0x3]
    %v39 = vlaneseq
    %v40 = vshrl.u32 %v39, 7
    %v41 = vsub.s32 0, %v40
    %v42 = vrot.slane %v37, %v41
    %v43 = vlaneseq
    %v44 = vshrl.u32 %v43, 7
    %v45 = vsub.s32 1, %v44
    %v46 = vrot.slane %v37, %v45
    %v47 = vcombine.low %v42, %v46
    %v49 = vunpack.c.l.s4 1983009808
    %v50 = vunpack.c.0.s8 %v49
    %v51 = vlaneseq
    %v52 = vshrl.u32 %v51, 7
    %v53 = vsub.s32 %v50, %v52
    %v54 = vrot.slane %v47, %v53
    %v56 = vadd.f32 %v36, %v54
    %57 = vst [vmem:[#allocation7] sm:$0xf] %v56
    // Predicated region
    $region18: #{tpu_custom_call.1} parent=1 // pred_check
      _
    $region19: #{tpu_custom_call.1} parent=1 // pred_check_branch
      %59 = sbr.rel (0) target = $region21
    $region20: #{tpu_custom_call.1} parent=1 // pred_region
      %s61 = ssub.s32 64, 64
      %62 = vsyncadd [#allocation4], %s61
      %s64 = sshll.u32 [#allocation7], 4
      %s65 = int_to_ptr.vmem [resolvable:$true] %s64
      %67 = dma.vmem_to_hbm [thread:$0]  %s65, 64, %s2, [#allocation4]
    $region21: #{tpu_custom_call.1} parent=1 // pred_fallthru
      _
    // Predicated region
    $region22: #{tpu_custom_call.1} parent=1 // pred_check
      _
    $region23: #{tpu_custom_call.1} parent=1 // pred_check_branch
      %69 = sbr.rel (0) target = $region25
    $region24: #{tpu_custom_call.1} parent=1 // pred_region
      %70 = dma.done [#allocation4], 64
    $region25: #{tpu_custom_call.1} parent=1 // pred_fallthru
      _
    %71 = vsyncpa [#allocation3], 1
    %72 = vsyncpa [#allocation6], 1
    %73 = vsyncpa [#allocation4], 1

</llo_original>
